<compile_context>
chip_gen: v7x
topology: tpu7x:2x2x1
jax: 0.10.0
libtpu: 0.0.40
codegen_flags: <defaults>
</compile_context>

<pallas_src>
import jax
import jax.numpy as jnp
from jax.experimental import pallas as pl
from jax.experimental.pallas import tpu as pltpu


def _mil_attention_kernel(x_ref, mask_ref, w1t_ref, b1_ref, w2_ref,
                          z_ref, f_ref):
    # x_ref:    (TB, Np, D) block of bags (native dtype)
    # mask_ref: (1, TB, Np) block (f32, padded instances are 0)
    # w1t_ref:  (D, A)  fc1.weight^T  (grid-invariant)
    # b1_ref:   (1, A)  fc1.bias (f32)
    # w2_ref:   (1, A)  fc2.weight row (f32, no bias)
    # z_ref:    (1, TB, D) block (X dtype),  f_ref: (1, TB, Np) block (f32)
    tb, n, d = x_ref.shape
    a = w1t_ref.shape[1]

    x = x_ref[...]                                   # native dtype for the MXU
    x2d = x.reshape(tb * n, d)                       # view: n % sublane == 0

    # fc1 + tanh: one big MXU matmul (TB*Np rows), f32 accumulation, EUP tanh.
    h = jnp.tanh(
        jnp.dot(x2d, w1t_ref[...], preferred_element_type=jnp.float32)
        + b1_ref[...])                               # (TB*Np, A) f32

    # fc2 (width-1 output): VPU multiply + lane (XLU) reduce.
    h3 = h.reshape(tb, n, a)                         # view: n % sublane == 0
    f = jnp.sum(h3 * w2_ref[...], axis=-1)           # (TB, Np) f32

    # Numerically stable masked softmax over the bag axis. Mask is applied
    # inside the select so masked-out logits can never produce inf*0 = NaN.
    m = mask_ref[0]                                  # (TB, Np) f32
    valid = m > 0
    mx = jnp.max(jnp.where(valid, f, -jnp.inf), axis=-1, keepdims=True)
    exp_f = jnp.where(valid, jnp.exp(f - mx), 0.0)   # (TB, Np)
    denom = jnp.sum(exp_f, axis=-1, keepdims=True)   # (TB, 1)
    s = exp_f * pl.reciprocal(denom, approx=True)    # (TB, Np)  EUP reciprocal

    # z[b, :] = sum_n s[b, n] * x[b, n, :]: multiply in X's dtype (bf16 VALU
    # on v6e/v7x; upcast by the compiler on v5e), accumulate bag sum in f32.
    prod = (x * s[:, :, None].astype(x.dtype)).astype(jnp.float32)
    z = jnp.sum(prod, axis=1)                        # (TB, D) f32

    z_ref[...] = z[None].astype(z_ref.dtype)
    f_ref[...] = f[None]                             # f32 logits


def _vmem_capacity_bytes():
    """Per-TensorCore VMEM capacity; falls back to 128 MiB (v5e/v6e)."""
    try:
        info = pltpu.get_tpu_info()
        cap = getattr(info, "vmem_capacity_bytes", None)
        if cap:
            return int(cap)
    except Exception:
        pass
    return 128 << 20


def _per_step_bytes(tb, N, D, A, dtype_bytes):
    """Honest per-grid-step VMEM working-set estimate."""
    x_block = 2 * tb * N * D * dtype_bytes        # X block, double-buffered
    x_f32 = 2 * tb * N * D * 4                    # f32 product / upcast temps
    h_f32 = 2 * tb * N * A * 4                    # h and the h*w2 temp
    mask_b = 2 * tb * N * 4                       # mask block (f32), 2 bufs
    outs = 2 * (tb * D * dtype_bytes + tb * N * 4)  # z / f blocks, 2 bufs
    weights = 2 * (D * A * dtype_bytes + 2 * A * 4)  # W1^T / b1 / w2, 2 bufs
    small = 4 * tb * N * 4                        # f / exp_f / s / select temps
    return x_block + x_f32 + h_f32 + mask_b + outs + weights + small


def _choose_tb(B, N, D, A, dtype_bytes, vmem_budget_bytes, target_rows=512):
    """Pick bags-per-grid-step TB (a divisor of B).

    Goals: (1) TB*N >= ~512 MXU rows so the fc1 slab feeds both 256-wide MXUs
    (v6e/v7x) / all four 128^2 MXUs (v5e); (2) per-step working set inside the
    generation-aware VMEM budget; (3) G >= 4 grid steps when possible so each
    v7x TensorCore gets >= 2 pipelined steps (also helps megacore on v6e).
    """
    divisors = [d for d in range(1, B + 1) if B % d == 0]
    fitting = [d for d in divisors
               if _per_step_bytes(d, N, D, A, dtype_bytes) <= vmem_budget_bytes]
    if not fitting:
        fitting = [1]
    tb = fitting[-1]
    for d in fitting:
        if d * N >= target_rows:
            tb = d
            break
    if B // tb < 4:
        smaller = [d for d in fitting if d < tb and B // d >= 4]
        if smaller:
            cand = smaller[-1]
            if cand * N >= 128 or tb * N < target_rows:
                tb = cand
    return tb


def mil_attention_pool(X, mask, w1, b1, w2, tb=None):
    """X: (B, N, D); mask: (B, N); w1: (A, D); b1: (A,); w2: (1, A).

    Returns (z, f): z (B, D) pooled features (X dtype), f (B, N) logits (f32).
    """
    B, N, D = X.shape
    A = w1.shape[0]
    dtype_bytes = jnp.dtype(X.dtype).itemsize

    # Pad the bag axis to the sublane tile for X's dtype so the in-kernel
    # leading-dim reshapes stay views (no per-step relayout copies).
    sub = max(8, 32 // dtype_bytes)
    Np = ((N + sub - 1) // sub) * sub
    if Np != N:
        X_p = jnp.pad(X, ((0, 0), (0, Np - N), (0, 0)))
        mask_p = jnp.pad(mask, ((0, 0), (0, Np - N)))
    else:
        X_p, mask_p = X, mask

    # Generation-aware budgets: v7x has 64 MiB VMEM/TC, v5e/v6e have 128 MiB.
    cap = _vmem_capacity_bytes()
    if cap <= (64 << 20):
        budget, limit_cap = 24 << 20, 48 << 20
    else:
        budget, limit_cap = 56 << 20, 100 << 20

    if tb is None:
        tb = _choose_tb(B, Np, D, A, dtype_bytes, budget)
    assert B % tb == 0, "TB must divide the batch size"
    G = B // tb

    mask_g = mask_p.reshape(G, tb, Np).astype(jnp.float32)
    w1t = jnp.asarray(w1).astype(X.dtype).T               # (D, A)
    b1r = jnp.asarray(b1, jnp.float32).reshape(1, A)      # (1, A)
    w2r = jnp.asarray(w2, jnp.float32).reshape(1, A)      # (1, A)

    need = _per_step_bytes(tb, Np, D, A, dtype_bytes)
    vmem_limit = int(min(limit_cap, max(32 << 20, 2 * need)))

    grid_spec = pltpu.PrefetchScalarGridSpec(
        num_scalar_prefetch=0,
        grid=(G,),
        in_specs=[
            pl.BlockSpec((tb, Np, D), lambda g: (g, 0, 0)),   # X (padded)
            pl.BlockSpec((1, tb, Np), lambda g: (g, 0, 0)),   # mask
            pl.BlockSpec((D, A), lambda g: (0, 0)),           # W1^T (shared)
            pl.BlockSpec((1, A), lambda g: (0, 0)),           # b1   (shared)
            pl.BlockSpec((1, A), lambda g: (0, 0)),           # W2   (shared)
        ],
        out_specs=[
            pl.BlockSpec((1, tb, D), lambda g: (g, 0, 0)),    # z
            pl.BlockSpec((1, tb, Np), lambda g: (g, 0, 0)),   # f
        ],
    )

    z_g, f_g = pl.pallas_call(
        _mil_attention_kernel,
        out_shape=(
            jax.ShapeDtypeStruct((G, tb, D), X.dtype),
            jax.ShapeDtypeStruct((G, tb, Np), jnp.float32),
        ),
        grid_spec=grid_spec,
        compiler_params=pltpu.CompilerParams(
            dimension_semantics=("parallel",),
            vmem_limit_bytes=vmem_limit,
        ),
    )(X_p, mask_g, w1t, b1r, w2r)

    z = z_g.reshape(B, D)
    f = f_g.reshape(B, Np)[:, :N]
    return z, f


def _reference(X, mask, w1, b1, w2):
    B, N, D = X.shape
    H = jnp.tanh(X.reshape(-1, D) @ w1.T + b1).reshape(B, N, -1)
    f = (H.reshape(-1, w1.shape[0]) @ w2.T).reshape(B, N, 1)
    exp_f = jnp.exp(f) * mask[..., None]
    s = exp_f / jnp.sum(exp_f, axis=1, keepdims=True)
    z = jnp.einsum("bnd,bno->bd", X, s)
    return z, f.reshape(B, N)


if __name__ == "__main__":
    # Small shapes consistent with the module: batch=8, bag_size=8, in_dim=32,
    # att_dim=32.
    B, N, D, A = 8, 8, 32, 32

    key = jax.random.PRNGKey(0)
    kx, kw1, kb1, kw2 = jax.random.split(key, 4)

    X = jax.random.normal(kx, (B, N, D), dtype=jnp.float32)

    # Non-trivial mask to exercise the masked-softmax path (no fully-masked
    # bags: those are 0/0-undefined in the reference module as well).
    mask = jnp.ones((B, N), dtype=jnp.float32)
    mask = mask.at[0, 5:].set(0.0)
    mask = mask.at[3, 7].set(0.0)

    # Deterministic PyTorch-Linear-style init: U(-1/sqrt(fan_in), 1/sqrt(fan_in))
    bound1 = 1.0 / (D ** 0.5)
    bound2 = 1.0 / (A ** 0.5)
    w1 = jax.random.uniform(kw1, (A, D), minval=-bound1, maxval=bound1,
                            dtype=jnp.float32)   # fc1.weight
    b1 = jax.random.uniform(kb1, (A,), minval=-bound1, maxval=bound1,
                            dtype=jnp.float32)   # fc1.bias
    w2 = jax.random.uniform(kw2, (1, A), minval=-bound2, maxval=bound2,
                            dtype=jnp.float32)   # fc2.weight (no bias)

    z, f = mil_attention_pool(X, mask, w1, b1, w2)
    jax.block_until_ready((z, f))

    z_ref, f_ref = _reference(X, mask, w1, b1, w2)
    assert z.shape == (B, D) and f.shape == (B, N)
    # f has no approximate ops on its path; z's normalization uses the EUP
    # approximate reciprocal, so it is compared a bit looser.
    assert jnp.allclose(f, f_ref, atol=1e-4, rtol=1e-4)
    assert jnp.allclose(z, z_ref, atol=2e-3, rtol=2e-3)

    print("KERNEL_OK")
</pallas_src>

<mosaic_0001>
module attributes {stable_mosaic.version = 11 : i64} {
  func.func @_mil_attention_kernel(%arg0: i32, %arg1: memref<2x8x32xf32, #tpu.memory_space<vmem>>, %arg2: memref<1x2x8xf32, #tpu.memory_space<vmem>>, %arg3: memref<32x32xf32, #tpu.memory_space<vmem>>, %arg4: memref<1x32xf32, #tpu.memory_space<vmem>>, %arg5: memref<1x32xf32, #tpu.memory_space<vmem>>, %arg6: memref<1x2x32xf32, #tpu.memory_space<vmem>>, %arg7: memref<1x2x8xf32, #tpu.memory_space<vmem>>) attributes {dimension_semantics = [#tpu.dimension_semantics<parallel>], iteration_bounds = array<i64: 4>, scalar_prefetch = 0 : i64, scratch_operands = 0 : i64, tpu.core_type = #tpu.core_type<tc>, window_params = [{transform_indices = @transform_0, window_bounds = array<i64: 2, 8, 32>}, {transform_indices = @transform_1, window_bounds = array<i64: 1, 2, 8>}, {pipeline_mode = #tpu.pipeline_mode<synchronous>, transform_indices = @transform_2, window_bounds = array<i64: 32, 32>}, {pipeline_mode = #tpu.pipeline_mode<synchronous>, transform_indices = @transform_3, window_bounds = array<i64: 1, 32>}, {pipeline_mode = #tpu.pipeline_mode<synchronous>, transform_indices = @transform_4, window_bounds = array<i64: 1, 32>}, {transform_indices = @transform_5, window_bounds = array<i64: 1, 2, 32>}, {transform_indices = @transform_6, window_bounds = array<i64: 1, 2, 8>}]} {
    %c0 = arith.constant 0 : index
    %c0_0 = arith.constant 0 : index
    %c0_1 = arith.constant 0 : index
    %0 = vector.load %arg1[%c0, %c0_0, %c0_1] : memref<2x8x32xf32, #tpu.memory_space<vmem>>, vector<2x8x32xf32>
    %1 = vector.shape_cast %0 : vector<2x8x32xf32> to vector<16x32xf32>
    %c0_2 = arith.constant 0 : index
    %c0_3 = arith.constant 0 : index
    %2 = vector.load %arg3[%c0_2, %c0_3] : memref<32x32xf32, #tpu.memory_space<vmem>>, vector<32x32xf32>
    %cst = arith.constant dense<0.000000e+00> : vector<16x32xf32>
    %3 = tpu.matmul %1, %2, %cst {dimension_numbers = #tpu.dot_dimension_numbers<[1], [0], [0], [1], [0, 0, 1, 1], [], []>} : vector<16x32xf32>, vector<32x32xf32>, vector<16x32xf32> -> vector<16x32xf32>
    %c0_4 = arith.constant 0 : index
    %c0_5 = arith.constant 0 : index
    %4 = vector.load %arg4[%c0_4, %c0_5] : memref<1x32xf32, #tpu.memory_space<vmem>>, vector<1x32xf32>
    %5 = vector.broadcast %4 : vector<1x32xf32> to vector<16x32xf32>
    %6 = arith.addf %3, %5 : vector<16x32xf32>
    %7 = math.tanh %6 : vector<16x32xf32>
    %8 = vector.shape_cast %7 : vector<16x32xf32> to vector<2x8x32xf32>
    %c0_6 = arith.constant 0 : index
    %c0_7 = arith.constant 0 : index
    %9 = vector.load %arg5[%c0_6, %c0_7] : memref<1x32xf32, #tpu.memory_space<vmem>>, vector<1x32xf32>
    %10 = vector.shape_cast %9 : vector<1x32xf32> to vector<1x1x32xf32>
    %11 = vector.broadcast %10 : vector<1x1x32xf32> to vector<2x8x32xf32>
    %12 = arith.mulf %8, %11 : vector<2x8x32xf32>
    %cst_8 = arith.constant dense<0.000000e+00> : vector<2x8xf32>
    %13 = vector.multi_reduction <add>, %12, %cst_8 [2] : vector<2x8x32xf32> to vector<2x8xf32>
    %c0_9 = arith.constant 0 : index
    %c0_10 = arith.constant 0 : index
    %c0_11 = arith.constant 0 : index
    %14 = vector.load %arg2[%c0_9, %c0_10, %c0_11] : memref<1x2x8xf32, #tpu.memory_space<vmem>>, vector<1x2x8xf32>
    %15 = vector.shape_cast %14 : vector<1x2x8xf32> to vector<2x8xf32>
    %cst_12 = arith.constant 0.000000e+00 : f32
    %16 = vector.broadcast %cst_12 : f32 to vector<2x8xf32>
    %17 = arith.cmpf ogt, %15, %16 : vector<2x8xf32>
    %cst_13 = arith.constant 0xFF800000 : f32
    %18 = vector.broadcast %cst_13 : f32 to vector<2x8xf32>
    %19 = arith.select %17, %13, %18 : vector<2x8xi1>, vector<2x8xf32>
    %cst_14 = arith.constant dense<0xFF800000> : vector<2xf32>
    %20 = vector.multi_reduction <maximumf>, %19, %cst_14 [1] : vector<2x8xf32> to vector<2xf32>
    %21 = vector.shape_cast %20 : vector<2xf32> to vector<2x1xf32>
    %22 = vector.broadcast %21 : vector<2x1xf32> to vector<2x8xf32>
    %23 = arith.subf %13, %22 : vector<2x8xf32>
    %24 = math.exp %23 : vector<2x8xf32>
    %cst_15 = arith.constant 0.000000e+00 : f32
    %25 = vector.broadcast %cst_15 : f32 to vector<2x8xf32>
    %26 = arith.select %17, %24, %25 : vector<2x8xi1>, vector<2x8xf32>
    %cst_16 = arith.constant dense<0.000000e+00> : vector<2xf32>
    %27 = vector.multi_reduction <add>, %26, %cst_16 [1] : vector<2x8xf32> to vector<2xf32>
    %28 = vector.shape_cast %27 : vector<2xf32> to vector<2x1xf32>
    %29 = tpu.reciprocal %28 {approx = true} : vector<2x1xf32> -> vector<2x1xf32>
    %30 = vector.broadcast %29 : vector<2x1xf32> to vector<2x8xf32>
    %31 = arith.mulf %26, %30 : vector<2x8xf32>
    %32 = vector.shape_cast %31 : vector<2x8xf32> to vector<2x8x1xf32>
    %33 = vector.broadcast %32 : vector<2x8x1xf32> to vector<2x8x32xf32>
    %34 = arith.mulf %0, %33 : vector<2x8x32xf32>
    %cst_17 = arith.constant dense<0.000000e+00> : vector<2x32xf32>
    %35 = vector.multi_reduction <add>, %34, %cst_17 [1] : vector<2x8x32xf32> to vector<2x32xf32>
    %36 = vector.shape_cast %35 : vector<2x32xf32> to vector<1x2x32xf32>
    %c0_18 = arith.constant 0 : index
    %c0_19 = arith.constant 0 : index
    %c0_20 = arith.constant 0 : index
    %37 = vector.load %arg6[%c0_18, %c0_19, %c0_20] : memref<1x2x32xf32, #tpu.memory_space<vmem>>, vector<1x2x32xf32>
    tpu.vector_store %arg6[%c0_18, %c0_19, %c0_20], %36 {strides = array<i32>} : memref<1x2x32xf32, #tpu.memory_space<vmem>>, vector<1x2x32xf32>,
    %38 = vector.shape_cast %13 : vector<2x8xf32> to vector<1x2x8xf32>
    %c0_21 = arith.constant 0 : index
    %c0_22 = arith.constant 0 : index
    %c0_23 = arith.constant 0 : index
    %39 = vector.load %arg7[%c0_21, %c0_22, %c0_23] : memref<1x2x8xf32, #tpu.memory_space<vmem>>, vector<1x2x8xf32>
    tpu.vector_store %arg7[%c0_21, %c0_22, %c0_23], %38 {strides = array<i32>} : memref<1x2x8xf32, #tpu.memory_space<vmem>>, vector<1x2x8xf32>,
    return
  }
  func.func @transform_0(%arg0: i32) -> (i32, i32, i32) {
    %c0_i32 = arith.constant 0 : i32
    %c0_i32_0 = arith.constant 0 : i32
    %c0_i32_1 = arith.constant 0 : i32
    return %arg0, %c0_i32, %c0_i32_0 : i32, i32, i32
  }
  func.func @transform_1(%arg0: i32) -> (i32, i32, i32) {
    %c0_i32 = arith.constant 0 : i32
    %c0_i32_0 = arith.constant 0 : i32
    %c0_i32_1 = arith.constant 0 : i32
    return %arg0, %c0_i32, %c0_i32_0 : i32, i32, i32
  }
  func.func @transform_2(%arg0: i32) -> (i32, i32) {
    %c0_i32 = arith.constant 0 : i32
    %c0_i32_0 = arith.constant 0 : i32
    %c0_i32_1 = arith.constant 0 : i32
    return %c0_i32, %c0_i32_0 : i32, i32
  }
  func.func @transform_3(%arg0: i32) -> (i32, i32) {
    %c0_i32 = arith.constant 0 : i32
    %c0_i32_0 = arith.constant 0 : i32
    %c0_i32_1 = arith.constant 0 : i32
    return %c0_i32, %c0_i32_0 : i32, i32
  }
  func.func @transform_4(%arg0: i32) -> (i32, i32) {
    %c0_i32 = arith.constant 0 : i32
    %c0_i32_0 = arith.constant 0 : i32
    %c0_i32_1 = arith.constant 0 : i32
    return %c0_i32, %c0_i32_0 : i32, i32
  }
  func.func @transform_5(%arg0: i32) -> (i32, i32, i32) {
    %c0_i32 = arith.constant 0 : i32
    %c0_i32_0 = arith.constant 0 : i32
    %c0_i32_1 = arith.constant 0 : i32
    return %arg0, %c0_i32, %c0_i32_0 : i32, i32, i32
  }
  func.func @transform_6(%arg0: i32) -> (i32, i32, i32) {
    %c0_i32 = arith.constant 0 : i32
    %c0_i32_0 = arith.constant 0 : i32
    %c0_i32_1 = arith.constant 0 : i32
    return %arg0, %c0_i32, %c0_i32_0 : i32, i32, i32
  }
}

</mosaic_0001>

<llo_original>
// kernel: tpu_custom_call.1
$region0: #{tpu_custom_call.1}
  #allocation0 [shape = 'u32[]', space=smem, size = 0x4, offset = 0x4, fixed_abs, tag = 'smem constant byte address 0x4 - core index']
  #allocation1 [shape = 'u32[144,128]{1,0:T(1,128)}', space=vmem, size = 0x12000, scoped, tag = 'internal scratch']
  %s0 = inlined_call_operand.hbm [shape: f32[8,8,32], index: 0, kind: input, shape index: {}]
  %s1 = inlined_call_operand.hbm [shape: f32[4,2,8], index: 1, kind: input, shape index: {}]
  %s2 = inlined_call_operand.hbm [shape: f32[32,32], index: 2, kind: input, shape index: {}]
  %s3 = inlined_call_operand.vmem [shape: f32[1,32], index: 3, kind: input, shape index: {}]
  %s4 = inlined_call_operand.vmem [shape: f32[1,32], index: 4, kind: input, shape index: {}]
  %s5 = inlined_call_operand.hbm [shape: f32[4,2,32], index: 5, kind: output, shape index: {0}]
  %s6 = inlined_call_operand.hbm [shape: f32[4,2,8], index: 6, kind: output, shape index: {1}]
  %7 = xla_tuple %s5, %s6
  %s8 = sld [smem:[#allocation0]]
  $region73: #{tpu_custom_call.1} parent=0
    _
  %s10 = ssub.s32 1, %s8
  %s11 = scalar_select 0, %s10, %s8
  $region1: #{tpu_custom_call.1} parent=0
    #allocation2 [shape = 'u8[16384]{0}', space=vmem, size = 0x4000, scoped, tag = 'input window, operand 0']
    #allocation3 [shape = 's32[2]{0}', space=sflag, size = 0x8, scoped, tag = 'scoped memory for tpu_custom_call.1']
    #allocation4 [shape = 's32[2]{0}', space=sflag, size = 0x8, scoped, tag = 'scoped memory for tpu_custom_call.1']
    #allocation5 [shape = 'u8[2048]{0}', space=vmem, size = 0x800, scoped, tag = 'input window, operand 1']
    #allocation6 [shape = 's32[2]{0}', space=sflag, size = 0x8, scoped, tag = 'scoped memory for tpu_custom_call.1']
    #allocation7 [shape = 'u8[16384]{0}', space=vmem, size = 0x4000, scoped, tag = 'input window, operand 2, single buffered']
    #allocation8 [shape = 'u8[2048]{0}', space=vmem, size = 0x800, scoped, tag = 'output window, operand 0']
    #allocation9 [shape = 'u8[2048]{0}', space=vmem, size = 0x800, scoped, tag = 'output window, operand 1']
    #allocation10 [shape = 's32[2]{0}', space=sflag, size = 0x8, scoped, tag = 'scoped memory for tpu_custom_call.1']
    %12 = vsyncpa [#allocation3], 0
    %s13 = scalar_lea.sflag [#allocation3], 1
    %14 = vsyncpa %s13, 0
    %15 = vsyncpa [#allocation6], 0
    %s16 = scalar_lea.sflag [#allocation6], 1
    %17 = vsyncpa %s16, 0
    %18 = vsyncpa [#allocation4], 0
    %s19 = scalar_lea.sflag [#allocation4], 1
    %20 = vsyncpa %s19, 0
    %21 = vsyncpa [#allocation10], 0
    %s22 = scalar_lea.sflag [#allocation10], 1
    %23 = vsyncpa %s22, 0
    loop: start=0, step=1, limit=6
    $region2: #{tpu_custom_call.1} parent=1 // loop_pre_header
      _
    $region3: #{tpu_custom_call.1} parent=1 // loop_header
      %s25 = sphi 0, %s29
      %p26 = scmp.ge.s32.totalorder %s25, 6
      %s35 = sphi 0, %s37
      %s38 = sphi 0, %s35
      %s39 = sphi 0, %s38
      %s55 = sphi 0, %s39
      %s61 = sphi 0, %s63
      %s64 = sphi 0, %s61
      %s65 = sphi 0, %s64
      %s81 = sphi 0, %s65
      %s85 = sphi 0, %s85
      %s87 = sphi 0, %s85
      %s88 = sphi 0, %s87
      %s102 = sphi 0, %s88
      %s106 = sphi 0, %s106
      %s108 = sphi 0, %s106
      %s109 = sphi 0, %s108
      %s123 = sphi 0, %s109
      %s127 = sphi 0, %s127
      %s129 = sphi 0, %s127
      %s130 = sphi 0, %s129
      %s144 = sphi 0, %s130
      %s150 = sphi 0, %s152
      %s153 = sphi 0, %s150
      %s154 = sphi 0, %s153
      %s170 = sphi 0, %s154
      %s176 = sphi 0, %s178
      %s179 = sphi 0, %s176
      %s180 = sphi 0, %s179
      %s196 = sphi 0, %s180
    $region4: #{tpu_custom_call.1} parent=1 // loop_header_branch
      %28 = sbr.rel (%p26) target = $region8
    $region5: #{tpu_custom_call.1} parent=1 // loop_body
      %s30 = ssub.s32 %s25, 1
      %s31 = ssub.s32 %s25, 2
      %s32 = sadd.s32 %s25, 1
      %s33 = ssub.s32 %s25, %s32
      %p34 = scmp.eq.s32.totalorder %s33, 0
      %s36 = sadd.s32 %s35, 1
      %s37 = scalar_select %p34, %s35, %s36
      %p40 = pneg %p34
      %p41 = scmp.eq.s32.totalorder %s25, 3
      %p42 = por %p40, %p41
      %p43 = scmp.ne.s32.totalorder %s35, %s38
      %p44 = scmp.eq.s32.totalorder %s25, 0
      %p45 = por %p43, %p44
      %p46 = scmp.ne.s32.totalorder %s35, %s38
      %p47 = scmp.eq.s32.totalorder %s30, 3
      %p48 = por %p46, %p47
      %p49 = scmp.ne.s32.totalorder %s38, %s39
      %p50 = scmp.eq.s32.totalorder %s30, 0
      %p51 = por %p49, %p50
      %p52 = scmp.ne.s32.totalorder %s38, %s39
      %p53 = scmp.eq.s32.totalorder %s31, 3
      %p54 = por %p52, %p53
      %p56 = scmp.ne.s32.totalorder %s39, %s55
      %p57 = scmp.eq.s32.totalorder %s31, 0
      %p58 = por %p56, %p57
      %s59 = ssub.s32 %s25, %s32
      %p60 = scmp.eq.s32.totalorder %s59, 0
      %s62 = sadd.s32 %s61, 1
      %s63 = scalar_select %p60, %s61, %s62
      %p66 = pneg %p60
      %p67 = scmp.eq.s32.totalorder %s25, 3
      %p68 = por %p66, %p67
      %p69 = scmp.ne.s32.totalorder %s61, %s64
      %p70 = scmp.eq.s32.totalorder %s25, 0
      %p71 = por %p69, %p70
      %p72 = scmp.ne.s32.totalorder %s61, %s64
      %p73 = scmp.eq.s32.totalorder %s30, 3
      %p74 = por %p72, %p73
      %p75 = scmp.ne.s32.totalorder %s64, %s65
      %p76 = scmp.eq.s32.totalorder %s30, 0
      %p77 = por %p75, %p76
      %p78 = scmp.ne.s32.totalorder %s64, %s65
      %p79 = scmp.eq.s32.totalorder %s31, 3
      %p80 = por %p78, %p79
      %p82 = scmp.ne.s32.totalorder %s65, %s81
      %p83 = scmp.eq.s32.totalorder %s31, 0
      %p84 = por %p82, %p83
      %s86 = sadd.s32 %s85, 1
      %p89 = scmp.eq.s32.totalorder %s25, 3
      %p90 = scmp.ne.s32.totalorder %s85, %s87
      %p91 = scmp.eq.s32.totalorder %s25, 0
      %p92 = por %p90, %p91
      %p93 = scmp.ne.s32.totalorder %s85, %s87
      %p94 = scmp.eq.s32.totalorder %s30, 3
      %p95 = por %p93, %p94
      %p96 = scmp.ne.s32.totalorder %s87, %s88
      %p97 = scmp.eq.s32.totalorder %s30, 0
      %p98 = por %p96, %p97
      %p99 = scmp.ne.s32.totalorder %s87, %s88
      %p100 = scmp.eq.s32.totalorder %s31, 3
      %p101 = por %p99, %p100
      %p103 = scmp.ne.s32.totalorder %s88, %s102
      %p104 = scmp.eq.s32.totalorder %s31, 0
      %p105 = por %p103, %p104
      %s107 = sadd.s32 %s106, 1
      %p110 = scmp.eq.s32.totalorder %s25, 3
      %p111 = scmp.ne.s32.totalorder %s106, %s108
      %p112 = scmp.eq.s32.totalorder %s25, 0
      %p113 = por %p111, %p112
      %p114 = scmp.ne.s32.totalorder %s106, %s108
      %p115 = scmp.eq.s32.totalorder %s30, 3
      %p116 = por %p114, %p115
      %p117 = scmp.ne.s32.totalorder %s108, %s109
      %p118 = scmp.eq.s32.totalorder %s30, 0
      %p119 = por %p117, %p118
      %p120 = scmp.ne.s32.totalorder %s108, %s109
      %p121 = scmp.eq.s32.totalorder %s31, 3
      %p122 = por %p120, %p121
      %p124 = scmp.ne.s32.totalorder %s109, %s123
      %p125 = scmp.eq.s32.totalorder %s31, 0
      %p126 = por %p124, %p125
      %s128 = sadd.s32 %s127, 1
      %p131 = scmp.eq.s32.totalorder %s25, 3
      %p132 = scmp.ne.s32.totalorder %s127, %s129
      %p133 = scmp.eq.s32.totalorder %s25, 0
      %p134 = por %p132, %p133
      %p135 = scmp.ne.s32.totalorder %s127, %s129
      %p136 = scmp.eq.s32.totalorder %s30, 3
      %p137 = por %p135, %p136
      %p138 = scmp.ne.s32.totalorder %s129, %s130
      %p139 = scmp.eq.s32.totalorder %s30, 0
      %p140 = por %p138, %p139
      %p141 = scmp.ne.s32.totalorder %s129, %s130
      %p142 = scmp.eq.s32.totalorder %s31, 3
      %p143 = por %p141, %p142
      %p145 = scmp.ne.s32.totalorder %s130, %s144
      %p146 = scmp.eq.s32.totalorder %s31, 0
      %p147 = por %p145, %p146
      %s148 = ssub.s32 %s25, %s32
      %p149 = scmp.eq.s32.totalorder %s148, 0
      %s151 = sadd.s32 %s150, 1
      %s152 = scalar_select %p149, %s150, %s151
      %p155 = pneg %p149
      %p156 = scmp.eq.s32.totalorder %s25, 3
      %p157 = por %p155, %p156
      %p158 = scmp.ne.s32.totalorder %s150, %s153
      %p159 = scmp.eq.s32.totalorder %s25, 0
      %p160 = por %p158, %p159
      %p161 = scmp.ne.s32.totalorder %s150, %s153
      %p162 = scmp.eq.s32.totalorder %s30, 3
      %p163 = por %p161, %p162
      %p164 = scmp.ne.s32.totalorder %s153, %s154
      %p165 = scmp.eq.s32.totalorder %s30, 0
      %p166 = por %p164, %p165
      %p167 = scmp.ne.s32.totalorder %s153, %s154
      %p168 = scmp.eq.s32.totalorder %s31, 3
      %p169 = por %p167, %p168
      %p171 = scmp.ne.s32.totalorder %s154, %s170
      %p172 = scmp.eq.s32.totalorder %s31, 0
      %p173 = por %p171, %p172
      %s174 = ssub.s32 %s25, %s32
      %p175 = scmp.eq.s32.totalorder %s174, 0
      %s177 = sadd.s32 %s176, 1
      %s178 = scalar_select %p175, %s176, %s177
      %p181 = pneg %p175
      %p182 = scmp.eq.s32.totalorder %s25, 3
      %p183 = por %p181, %p182
      %p184 = scmp.ne.s32.totalorder %s176, %s179
      %p185 = scmp.eq.s32.totalorder %s25, 0
      %p186 = por %p184, %p185
      %p187 = scmp.ne.s32.totalorder %s176, %s179
      %p188 = scmp.eq.s32.totalorder %s30, 3
      %p189 = por %p187, %p188
      %p190 = scmp.ne.s32.totalorder %s179, %s180
      %p191 = scmp.eq.s32.totalorder %s30, 0
      %p192 = por %p190, %p191
      %p193 = scmp.ne.s32.totalorder %s179, %s180
      %p194 = scmp.eq.s32.totalorder %s31, 3
      %p195 = por %p193, %p194
      %p197 = scmp.ne.s32.totalorder %s180, %s196
      %p198 = scmp.eq.s32.totalorder %s31, 0
      %p199 = por %p197, %p198
      %p200 = scmp.le.s32.totalorder 1, %s25
      %p201 = scmp.lt.s32.totalorder %s25, 5
      %p202 = pnand %p200, %p201
      %p203 = pneg %p202
      // Predicated region
      $region9: #{tpu_custom_call.1} parent=5 // pred_check
        _
      $region10: #{tpu_custom_call.1} parent=5 // pred_check_branch
        %205 = sbr.rel (%p202) target = $region12
      $region11: #{tpu_custom_call.1} parent=5 // pred_region
        %s206 = ssub.s32 %s25, 1
        // Predicated region
        $region13: #{tpu_custom_call.1} parent=11 // pred_check
          %p207 = pneg %p98
        $region14: #{tpu_custom_call.1} parent=11 // pred_check_branch
          %209 = sbr.rel (%p207) target = $region16
        $region15: #{tpu_custom_call.1} parent=11 // pred_region
          %s211 = ssub.s32 512, 512
          %212 = vsyncadd [#allocation6], %s211
          %s213 = sshll.u32 [#allocation7], 4
          %s214 = int_to_ptr.vmem [resolvable:$true] %s213
          %219 = dma.hbm_to_vmem [thread:$0]  %s2, 512, %s214, [#allocation6], 128, 128, 8
        $region16: #{tpu_custom_call.1} parent=11 // pred_fallthru
          _
        // Predicated region
        $region17: #{tpu_custom_call.1} parent=11 // pred_check
          %p220 = pneg %p119
        $region18: #{tpu_custom_call.1} parent=11 // pred_check_branch
          %222 = sbr.rel (%p220) target = $region20
        $region19: #{tpu_custom_call.1} parent=11 // pred_region
          _
        $region20: #{tpu_custom_call.1} parent=11 // pred_fallthru
          _
        // Predicated region
        $region21: #{tpu_custom_call.1} parent=11 // pred_check
          %p223 = pneg %p140
        $region22: #{tpu_custom_call.1} parent=11 // pred_check_branch
          %225 = sbr.rel (%p223) target = $region24
        $region23: #{tpu_custom_call.1} parent=11 // pred_region
          _
        $region24: #{tpu_custom_call.1} parent=11 // pred_fallthru
          _
      $region12: #{tpu_custom_call.1} parent=5 // pred_fallthru
        _
      %p226 = scmp.lt.s32.totalorder %s25, 4
      // Predicated region
      $region25: #{tpu_custom_call.1} parent=5 // pred_check
        %p227 = pneg %p226
      $region26: #{tpu_custom_call.1} parent=5 // pred_check_branch
        %229 = sbr.rel (%p227) target = $region28
      $region27: #{tpu_custom_call.1} parent=5 // pred_region
        // Predicated region
        $region29: #{tpu_custom_call.1} parent=27 // pred_check
          %p230 = pneg %p45
        $region30: #{tpu_custom_call.1} parent=27 // pred_check_branch
          %232 = sbr.rel (%p230) target = $region32
        $region31: #{tpu_custom_call.1} parent=27 // pred_region
          %s233 = sand.u32 %s35, 1
          %s234 = scalar_lea.sflag [#allocation3], %s233
          %s235 = sand.u32 %s35, 1
          %s236 = smul.addr %s235, 16
          %s237 = scalar_lea.vmem [#allocation2], %s236
          %s238 = smul.u32 2, %s25
          %s240 = ssub.s32 256, 256
          %241 = vsyncadd %s234, %s240
          %s242 = smul.addr %s238, 128
          %s243 = scalar_lea.hbm %s0, %s242
          %s244 = sshll.u32 %s237, 4
          %s245 = int_to_ptr.vmem [resolvable:$true] %s244
          %250 = dma.hbm_to_vmem [thread:$0]  %s243, 256, %s245, %s234, 128, 128, 8
        $region32: #{tpu_custom_call.1} parent=27 // pred_fallthru
          _
        // Predicated region
        $region33: #{tpu_custom_call.1} parent=27 // pred_check
          %p251 = pneg %p71
        $region34: #{tpu_custom_call.1} parent=27 // pred_check_branch
          %253 = sbr.rel (%p251) target = $region36
        $region35: #{tpu_custom_call.1} parent=27 // pred_region
          %s254 = sand.u32 %s25, 1
          %s255 = scalar_lea.sflag [#allocation6], %s254
          %s256 = sand.u32 %s61, 1
          %s257 = smul.addr %s256, 2
          %s258 = scalar_lea.vmem [#allocation5], %s257
          %s260 = ssub.s32 32, 32
          %261 = vsyncadd %s255, %s260
          %s262 = smul.addr %s25, 32
          %s263 = scalar_lea.hbm %s1, %s262
          %s265 = sshll.u32 %s258, 4
          %s266 = int_to_ptr.vmem [resolvable:$true] %s265
          %268 = dma.hbm_to_vmem [thread:$0]  %s263, 32, %s266, %s255
        $region36: #{tpu_custom_call.1} parent=27 // pred_fallthru
          _
      $region28: #{tpu_custom_call.1} parent=5 // pred_fallthru
        _
      %p269 = scmp.le.s32.totalorder 1, %s25
      %p270 = scmp.lt.s32.totalorder %s25, 5
      %p271 = pnand %p269, %p270
      %p272 = pneg %p271
      // Predicated region
      $region37: #{tpu_custom_call.1} parent=5 // pred_check
        _
      $region38: #{tpu_custom_call.1} parent=5 // pred_check_branch
        %274 = sbr.rel (%p271) target = $region40
      $region39: #{tpu_custom_call.1} parent=5 // pred_region
        %s275 = ssub.s32 %s25, 1
        %s276 = sand.u32 %s38, 1
        %s277 = scalar_lea.sflag [#allocation3], %s276
        %s278 = sand.u32 %s38, 1
        %s279 = smul.addr %s278, 16
        %s280 = scalar_lea.vmem [#allocation2], %s279
        // Predicated region
        $region41: #{tpu_custom_call.1} parent=39 // pred_check
          %p281 = pneg %p51
        $region42: #{tpu_custom_call.1} parent=39 // pred_check_branch
          %283 = sbr.rel (%p281) target = $region44
        $region43: #{tpu_custom_call.1} parent=39 // pred_region
          %284 = dma.done %s277, 256
        $region44: #{tpu_custom_call.1} parent=39 // pred_fallthru
          _
        %s285 = sand.u32 %s30, 1
        %s286 = scalar_lea.sflag [#allocation6], %s285
        %s287 = sand.u32 %s64, 1
        %s288 = smul.addr %s287, 2
        %s289 = scalar_lea.vmem [#allocation5], %s288
        // Predicated region
        $region45: #{tpu_custom_call.1} parent=39 // pred_check
          %p290 = pneg %p77
        $region46: #{tpu_custom_call.1} parent=39 // pred_check_branch
          %292 = sbr.rel (%p290) target = $region48
        $region47: #{tpu_custom_call.1} parent=39 // pred_region
          %293 = dma.done %s286, 32
        $region48: #{tpu_custom_call.1} parent=39 // pred_fallthru
          _
        // Predicated region
        $region49: #{tpu_custom_call.1} parent=39 // pred_check
          %p294 = pneg %p98
        $region50: #{tpu_custom_call.1} parent=39 // pred_check_branch
          %296 = sbr.rel (%p294) target = $region52
        $region51: #{tpu_custom_call.1} parent=39 // pred_region
          %297 = dma.done [#allocation6], 512
        $region52: #{tpu_custom_call.1} parent=39 // pred_fallthru
          _
        %s298 = sand.u32 %s38, 1
        %s299 = scalar_lea.sflag [#allocation3], %s298
        %s300 = sand.u32 %s38, 1
        %s301 = smul.addr %s300, 16
        %s302 = scalar_lea.vmem [#allocation2], %s301
        %p303 = pneg %p51
        %p304 = pneg %p48
        %s305 = sand.u32 %s30, 1
        %s306 = scalar_lea.sflag [#allocation6], %s305
        %s307 = sand.u32 %s64, 1
        %s308 = smul.addr %s307, 2
        %s309 = scalar_lea.vmem [#allocation5], %s308
        %p310 = pneg %p77
        %p311 = pneg %p74
        %p312 = pneg %p98
        %p313 = pneg %p95
        %p314 = pneg %p119
        %p315 = pneg %p116
        %p316 = pneg %p140
        %p317 = pneg %p137
        %p318 = pneg %p166
        %p319 = pneg %p163
        %s320 = sand.u32 %s153, 1
        %s321 = scalar_lea.sflag [#allocation4], %s320
        %s322 = sand.u32 %s153, 1
        %s323 = smul.addr %s322, 2
        %s324 = scalar_lea.vmem [#allocation8], %s323
        %p325 = pneg %p192
        %p326 = pneg %p189
        %s327 = sand.u32 %s179, 1
        %s328 = scalar_lea.sflag [#allocation10], %s327
        %s329 = sand.u32 %s179, 1
        %s330 = smul.addr %s329, 2
        %s331 = scalar_lea.vmem [#allocation9], %s330
        %s332 = smul.u32 2, %s30
        %v333 = vld [vmem:[%s280] sm:$0xff]
        %v334 = vld [vmem:[%s280 + $0x8] sm:$0xff]
        %v335 = vld [vmem:[#allocation7] sm:$0xff]
        %v336 = vld [vmem:[#allocation7 + $0x8] sm:$0xff]
        %v337 = vld [vmem:[#allocation7 + $0x10] sm:$0xff]
        %v338 = vld [vmem:[#allocation7 + $0x18] sm:$0xff]
        %v339 = vld [vmem:[%s3] sm:$0x1]
        %v341 = vlaneseq
        %v342 = vshrl.u32 %v341, 7
        %v343 = vsub.s32 0, %v342
        %v344 = vrot.slane %v339, %v343
        %vm346 = vcmask 261120
        %v348 = vsel %vm346, %v333, 0
        %v351 = vsel %vm346, %v334, 0
        %353 = vmatprep.subr.mxu0 0.0
        %354 = vmatpush1.msra.mxu0 %v335
        %355 = vmatprep.subr.mxu0 0.0
        %356 = vmatpush1.msra.mxu0 %v336
        %357 = vmatprep.subr.mxu0 0.0
        %358 = vmatpush1.msra.mxu0 %v337
        %359 = vmatprep.subr.mxu0 0.0
        %360 = vmatpush1.msra.mxu0 %v338
        %361 = vmatprep.subr.mxu0 0.0
        %362 = vmatpush1.msra.mxu0 0.0
        %363 = vmatprep.subr.mxu0 0.0
        %364 = vmatpush1.msra.mxu0 0.0
        %365 = vmatprep.subr.mxu0 0.0
        %366 = vmatpush1.msra.mxu0 0.0
        %367 = vmatprep.subr.mxu0 0.0
        %368 = vmatpush1.msra.mxu0 0.0
        %369 = vmatprep.subr.mxu0 0.0
        %370 = vmatpush1.msra.mxu0 0.0
        %371 = vmatprep.subr.mxu0 0.0
        %372 = vmatpush1.msra.mxu0 0.0
        %373 = vmatprep.subr.mxu0 0.0
        %374 = vmatpush1.msra.mxu0 0.0
        %375 = vmatprep.subr.mxu0 0.0
        %376 = vmatpush1.msra.mxu0 0.0
        %377 = vmatprep.subr.mxu0 0.0
        %378 = vmatpush1.msra.mxu0 0.0
        %379 = vmatprep.subr.mxu0 0.0
        %380 = vmatpush1.msra.mxu0 0.0
        %381 = vmatprep.subr.mxu0 0.0
        %382 = vmatpush1.msra.mxu0 0.0
        %383 = vmatprep.subr.mxu0 0.0
        %384 = vmatpush1.msra.mxu0 0.0
        %385 = vmatprep.subr.mxu0 0.0
        %386 = vmatpush1.msra.mxu0 0.0
        %387 = vmatprep.subr.mxu0 0.0
        %388 = vmatpush1.msra.mxu0 0.0
        %389 = vmatprep.subr.mxu0 0.0
        %390 = vmatpush1.msra.mxu0 0.0
        %391 = vmatprep.subr.mxu0 0.0
        %392 = vmatpush1.msra.mxu0 0.0
        %393 = vmatprep.subr.mxu0 0.0
        %394 = vmatpush1.msra.mxu0 0.0
        %395 = vmatprep.subr.mxu0 0.0
        %396 = vmatpush1.msra.mxu0 0.0
        %397 = vmatprep.subr.mxu0 0.0
        %398 = vmatpush1.msra.mxu0 0.0
        %399 = vmatprep.subr.mxu0 0.0
        %400 = vmatpush1.msra.mxu0 0.0
        %401 = vmatprep.subr.mxu0 0.0
        %402 = vmatpush1.msra.mxu0 0.0
        %403 = vmatprep.subr.mxu0 0.0
        %404 = vmatpush1.msra.mxu0 0.0
        %405 = vmatprep.subr.mxu0 0.0
        %406 = vmatpush1.msra.mxu0 0.0
        %407 = vmatprep.subr.mxu0 0.0
        %408 = vmatpush1.msra.mxu0 0.0
        %409 = vmatprep.subr.mxu0 0.0
        %410 = vmatpush1.msra.mxu0 0.0
        %411 = vmatprep.subr.mxu0 0.0
        %412 = vmatpush1.msra.mxu0 0.0
        %413 = vmatprep.subr.mxu0 0.0
        %414 = vmatpush1.msra.mxu0 0.0
        %415 = vmatprep.subr.mxu0 0.0
        %416 = vmatpush1.msra.mxu0 0.0
        %417 = vmatprep.mubr.f32.mxu0 0.0
        %418 = vmatmul.mubr.f32.gmra.mrb[0].mxu0 %v348
        %v419 = vpop.f32.mrb[0].mxu0
        %v420 = vadd.f32 %v344, %v419
        %v421 = vpop.f32.mrb[0].mxu0
        %422 = vmatprep.mubr.f32.mxu0 0.0
        %423 = vmatmul.mubr.f32.gmra.mrb[0].mxu0 %v351
        %v424 = vpop.f32.mrb[0].mxu0
        %v425 = vadd.f32 %v344, %v424
        %v426 = vpop.f32.mrb[0].mxu0
        %427 = vdwg.mxu0
        %v428 = vtanh.pop %v420
        %v429 = vtanh.pop %v425
        %v430 = vld [vmem:[%s4] sm:$0x1]
        %v432 = vlaneseq
        %v433 = vshrl.u32 %v432, 7
        %v434 = vsub.s32 0, %v433
        %v435 = vrot.slane %v430, %v434
        %v437 = vmul.f32 %v428, %v435
        %v438 = vmul.f32 %v429, %v435
        %v439 = vsel %vm346, %v437, 0.0
        %440 = vadd.xlane.f32.xlu0 %v439
        %v441 = vpop.xlane.xlu0 %440
        %v442 = vsel %vm346, %v438, 0.0
        %443 = vadd.xlane.f32.xlu0 %v442
        %v444 = vpop.xlane.xlu0 %443
        %v445 = vld [vmem:[%s289] sm:$0x3]
        %vm446 = vcmp.gt.f32.partialorder %v445, 0.0
        %v449 = vlaneseq
        %v450 = vand.u32 %v449, 127
        %v451 = vlaneseq
        %v452 = vshrl.u32 %v451, 7
        %v453 = vsub.s32 %v450, %v452
        %v454 = vrot.slane %v441, %v453
        %v455 = vlaneseq
        %v456 = vshrl.u32 %v455, 7
        %v457 = vsub.s32 %v450, %v456
        %v458 = vrot.slane %v444, %v457
        %vm459 = vcmask 1041409
        %v460 = vsel %vm459, %v458, %v454
        %v462 = vsel %vm446, %v460, -inf
        %vm463 = vcmask 58368
        %v464 = vsel %vm463, %v462, -inf
        %465 = vmax.xlane.f32.xlu0 %v464
        %v466 = vpop.xlane.xlu0 %465
        %v468 = vlaneseq
        %v469 = vshrl.u32 %v468, 7
        %v470 = vsub.s32 0, %v469
        %v471 = vrot.slane %v466, %v470
        %v472 = vlaneseq
        %v473 = vshrl.u32 %v472, 7
        %v474 = vsub.s32 1, %v473
        %v475 = vrot.slane %v466, %v474
        %v478 = vsub.f32 %v441, %v471
        %v479 = vsub.f32 %v444, %v475
        %v480 = vmul.f32 %v478, 1.442695
        %v481 = vpow.pop %v480
        %v482 = vmul.f32 %v479, 1.442695
        %v483 = vpow.pop %v482
        %486 = vset.pattern.permute.xlu0 0
        %487 = vperm.xlu0 %486, %v481
        %v488 = vpop.permute.xlu0 %487
        %489 = vset.pattern.permute.xlu0 0
        %490 = vperm.xlu0 %489, %v483
        %v491 = vpop.permute.xlu0 %490
        %v492 = vlaneseq
        %v493 = vshrl.u32 %v492, 7
        %v494 = vsub.s32 %v450, %v493
        %v495 = vrot.slane %v488, %v494
        %v496 = vlaneseq
        %v497 = vshrl.u32 %v496, 7
        %v498 = vsub.s32 %v450, %v497
        %v499 = vrot.slane %v491, %v498
        %v500 = vsel %vm459, %v499, %v495
        %v502 = vsel %vm446, %v500, 0.0
        %v503 = vsel %vm463, %v502, 0.0
        %504 = vadd.xlane.f32.xlu0 %v503
        %v505 = vpop.xlane.xlu0 %504
        %v506 = vrcp.pop %v505
        %v507 = vmul.f32 %v502, %v506
        %v508 = vlaneseq
        %v509 = vshrl.u32 %v508, 7
        %v510 = vsub.s32 0, %v509
        %v511 = vrot.slane %v507, %v510
        %513 = vbcast.lane.b32.xlu0 %v511, 256
        %v514 = vpop.permute.xlu0 %513
        %v515 = vlaneseq
        %v516 = vshrl.u32 %v515, 7
        %v517 = vsub.s32 1, %v516
        %v518 = vrot.slane %v507, %v517
        %520 = vbcast.lane.b32.xlu0 %v518, 256
        %v521 = vpop.permute.xlu0 %520
        %v522 = vmul.f32 %v333, %v514
        %v523 = vmul.f32 %v334, %v521
        %v524 = vsel %vm346, %v522, 0.0
        %v525 = vrot.slane %v524, 4
        %v526 = vadd.f32 %v524, %v525
        %v527 = vrot.slane %v526, 2
        %v528 = vadd.f32 %v526, %v527
        %v529 = vrot.slane %v528, 1
        %v530 = vadd.f32 %v528, %v529
        %v531 = vsel %vm346, %v523, 0.0
        %v532 = vrot.slane %v531, 4
        %v533 = vadd.f32 %v531, %v532
        %v534 = vrot.slane %v533, 2
        %v535 = vadd.f32 %v533, %v534
        %v536 = vrot.slane %v535, 1
        %v537 = vadd.f32 %v535, %v536
        %v540 = vsel %vm459, %v537, %v530
        %vm542 = vcmask 254976
        %543 = vst.msk [vmem:[%s324] sm:$0x3] %vm542, %v540
        %544 = vst.msk [vmem:[%s331] sm:$0x3] %vm463, %v460
        %s545 = sand.u32 %s153, 1
        %s546 = scalar_lea.sflag [#allocation4], %s545
        %s547 = sand.u32 %s153, 1
        %s548 = smul.addr %s547, 2
        %s549 = scalar_lea.vmem [#allocation8], %s548
        %s550 = sand.u32 %s179, 1
        %s551 = scalar_lea.sflag [#allocation10], %s550
        %s552 = sand.u32 %s179, 1
        %s553 = smul.addr %s552, 2
        %s554 = scalar_lea.vmem [#allocation9], %s553
        // Predicated region
        $region53: #{tpu_custom_call.1} parent=39 // pred_check
          %p555 = pneg %p163
        $region54: #{tpu_custom_call.1} parent=39 // pred_check_branch
          %557 = sbr.rel (%p555) target = $region56
        $region55: #{tpu_custom_call.1} parent=39 // pred_region
          %s559 = ssub.s32 32, 32
          %560 = vsyncadd %s546, %s559
          %s561 = smul.addr %s30, 32
          %s562 = scalar_lea.hbm %s5, %s561
          %s564 = sshll.u32 %s549, 4
          %s565 = int_to_ptr.vmem [resolvable:$true] %s564
          %567 = dma.vmem_to_hbm [thread:$0]  %s565, 32, %s562, %s546
        $region56: #{tpu_custom_call.1} parent=39 // pred_fallthru
          _
        // Predicated region
        $region57: #{tpu_custom_call.1} parent=39 // pred_check
          %p568 = pneg %p189
        $region58: #{tpu_custom_call.1} parent=39 // pred_check_branch
          %570 = sbr.rel (%p568) target = $region60
        $region59: #{tpu_custom_call.1} parent=39 // pred_region
          %s572 = ssub.s32 32, 32
          %573 = vsyncadd %s551, %s572
          %s574 = smul.addr %s30, 32
          %s575 = scalar_lea.hbm %s6, %s574
          %s577 = sshll.u32 %s554, 4
          %s578 = int_to_ptr.vmem [resolvable:$true] %s577
          %580 = dma.vmem_to_hbm [thread:$0]  %s578, 32, %s575, %s551
        $region60: #{tpu_custom_call.1} parent=39 // pred_fallthru
          _
      $region40: #{tpu_custom_call.1} parent=5 // pred_fallthru
        _
      %p581 = scmp.le.s32.totalorder 2, %s25
      // Predicated region
      $region61: #{tpu_custom_call.1} parent=5 // pred_check
        %p582 = pneg %p581
      $region62: #{tpu_custom_call.1} parent=5 // pred_check_branch
        %584 = sbr.rel (%p582) target = $region64
      $region63: #{tpu_custom_call.1} parent=5 // pred_region
        %s585 = ssub.s32 %s25, 2
        // Predicated region
        $region65: #{tpu_custom_call.1} parent=63 // pred_check
          %p586 = pneg %p169
        $region66: #{tpu_custom_call.1} parent=63 // pred_check_branch
          %588 = sbr.rel (%p586) target = $region68
        $region67: #{tpu_custom_call.1} parent=63 // pred_region
          %s589 = sand.u32 %s154, 1
          %s590 = scalar_lea.sflag [#allocation4], %s589
          %s591 = sand.u32 %s154, 1
          %s592 = smul.addr %s591, 2
          %s593 = scalar_lea.vmem [#allocation8], %s592
          %594 = dma.done %s590, 32
        $region68: #{tpu_custom_call.1} parent=63 // pred_fallthru
          _
        // Predicated region
        $region69: #{tpu_custom_call.1} parent=63 // pred_check
          %p595 = pneg %p195
        $region70: #{tpu_custom_call.1} parent=63 // pred_check_branch
          %597 = sbr.rel (%p595) target = $region72
        $region71: #{tpu_custom_call.1} parent=63 // pred_region
          %s598 = sand.u32 %s180, 1
          %s599 = scalar_lea.sflag [#allocation10], %s598
          %s600 = sand.u32 %s180, 1
          %s601 = smul.addr %s600, 2
          %s602 = scalar_lea.vmem [#allocation9], %s601
          %603 = dma.done %s599, 32
        $region72: #{tpu_custom_call.1} parent=63 // pred_fallthru
          _
      $region64: #{tpu_custom_call.1} parent=5 // pred_fallthru
        _
    $region6: #{tpu_custom_call.1} parent=1 // loop_footer
      %s29 = sadd.s32 1, %s25
    $region7: #{tpu_custom_call.1} parent=1 // loop_footer_branch
      %24 = sbr.rel target = $region3
    $region8: #{tpu_custom_call.1} parent=1 // loop_exit
      _
    %604 = vsyncpa [#allocation3], 1
    %s605 = scalar_lea.sflag [#allocation3], 1
    %606 = vsyncpa %s605, 1
    %607 = vsyncpa [#allocation6], 1
    %s608 = scalar_lea.sflag [#allocation6], 1
    %609 = vsyncpa %s608, 1
    %610 = vsyncpa [#allocation4], 1
    %s611 = scalar_lea.sflag [#allocation4], 1
    %612 = vsyncpa %s611, 1
    %613 = vsyncpa [#allocation10], 1
    %s614 = scalar_lea.sflag [#allocation10], 1
    %615 = vsyncpa %s614, 1

</llo_original>
